<compile_context>
chip_gen: v5e
topology: v5e:2x2
jax: 0.10.0
libtpu: 0.0.40
codegen_flags: <defaults>
</compile_context>

<pallas_src>
import jax
import jax.numpy as jnp
from jax.experimental import pallas as pl
from jax.experimental.pallas import tpu as pltpu


def _d_ac_gemm_kernel(w_ref, p_ref, o_ref):
    """One image: out (Ctot, H*W) = W (Ctot, K) @ patches (K, H*W).

    w_ref: (Ctot, K)     fused weight slab (grid-invariant, DMA'd once)
    p_ref: (K, H*W)      im2col patches for this image (H*W lane-dense)
    o_ref: (Ctot, H*W)   channel-major output block (NCHW-flat)
    """
    o_ref[...] = jnp.dot(
        w_ref[...], p_ref[...],
        preferred_element_type=jnp.float32).astype(o_ref.dtype)


def _fused_weight_slab(w_sq, w_v, w_h, p):
    """Fold square/ver/hor branch weights into one (Ctot, Cin*KH*KW) slab."""
    C1, Cin, KH, KW = w_sq.shape
    C2, C3 = w_v.shape[0], w_h.shape[0]
    w = jnp.zeros((C1 + C2 + C3, Cin, KH, KW), w_sq.dtype)
    w = w.at[:C1].set(w_sq)                                 # full k x k taps
    w = w.at[C1:C1 + C2, :, :, p].set(w_v[:, :, :, 0])      # centre column
    w = w.at[C1 + C2:, :, p, :].set(w_h[:, :, 0, :])        # centre row
    # Flattened (c, kh, kw) order — must match the wrapper's patch ordering.
    return w.reshape(C1 + C2 + C3, Cin * KH * KW)


def d_ac_forward(x, params):
    """D_AC forward: three conv branches fused into one Pallas GEMM.

    x: (N, Cin, H, W) float32 NCHW -> (N, C1+C2+C3, H, W) NCHW
    """
    w_sq, w_v, w_h = params["w_square"], params["w_ver"], params["w_hor"]
    p = params["padding"]
    N, Cin, H, W = x.shape
    C1, _, KH, KW = w_sq.shape
    C2, C3 = w_v.shape[0], w_h.shape[0]
    # The PyTorch module's torch.cat only succeeds when 2*p == k-1 (stride=1,
    # dilation=1); that is also what lets us fuse all branches into one conv.
    assert KH == KW and 2 * p == KH - 1, (
        "D_AC requires 2*padding == kernel_size - 1 for the branch outputs "
        "to be concatenable")
    Ctot = C1 + C2 + C3
    K = Cin * KH * KW
    HW = H * W

    # Fused weight slab (Ctot, K) = (11, 36).  Tiny; VMEM tiles it to (16,128)
    # internally, which is negligible and paid once (grid-invariant block).
    w_slab = _fused_weight_slab(w_sq, w_v, w_h, p)

    # im2col in the wrapper (one small fused XLA pass over ~5 KiB of input) so
    # the kernel is a pure GEMM — no in-kernel narrow slices / reshapes /
    # concatenates crossing (8,128) tile boundaries.
    xp = jnp.pad(x, ((0, 0), (0, 0), (p, p), (p, p)))
    taps = [xp[:, :, kh:kh + H, kw:kw + W]
            for kh in range(KH) for kw in range(KW)]
    patches = jnp.stack(taps, axis=2)                   # (N, Cin, KH*KW, H, W)
    patches = patches.reshape(N, K, HW)                 # K in (c, kh, kw) order

    out = pl.pallas_call(
        _d_ac_gemm_kernel,
        out_shape=jax.ShapeDtypeStruct((N, Ctot, HW), x.dtype),
        grid=(N,),
        in_specs=[
            # Grid-invariant weight slab: constant index_map => single DMA.
            pl.BlockSpec((Ctot, K), lambda n: (0, 0)),
            # Per-image patches: K on sublanes, HW=256 lane-dense.
            pl.BlockSpec((pl.Squeezed(), K, HW), lambda n: (n, 0, 0)),
        ],
        # Channel-major output block: Ctot on sublanes, HW on lanes => emits
        # NCHW directly (no wrapper slice/transpose afterwards).
        out_specs=pl.BlockSpec((pl.Squeezed(), Ctot, HW), lambda n: (n, 0, 0)),
        compiler_params=pltpu.CompilerParams(
            dimension_semantics=("parallel",)),
        cost_estimate=pl.CostEstimate(
            flops=2 * N * Ctot * K * HW,
            transcendentals=0,
            bytes_accessed=4 * (N * K * HW + Ctot * K + N * Ctot * HW)),
    )(w_slab, patches)

    # Output is already channel-major; this reshape is metadata-only.
    return out.reshape(N, Ctot, H, W)


def init_params(key, in_channels, out_channels, kernel_size, padding):
    c1 = int(out_channels * 0.5)
    c2 = int(out_channels * 0.33)
    c3 = int(out_channels * 0.167)
    k1, k2, k3 = jax.random.split(key, 3)
    params = {
        "w_square": 0.1 * jax.random.normal(
            k1, (c1, in_channels, kernel_size, kernel_size), jnp.float32),
        "w_ver": 0.1 * jax.random.normal(
            k2, (c2, in_channels, kernel_size, 1), jnp.float32),
        "w_hor": 0.1 * jax.random.normal(
            k3, (c3, in_channels, 1, kernel_size), jnp.float32),
        "padding": padding,
    }
    # Offset-predictor conv of the deformable branch is zero-initialised
    # (standard DCN init) => offsets are zero and the deformable conv equals a
    # plain kernel_size x kernel_size conv.
    return params


def _ref_conv(x, w, pad_h, pad_w):
    return jax.lax.conv_general_dilated(
        x, w, window_strides=(1, 1),
        padding=((pad_h, pad_h), (pad_w, pad_w)),
        dimension_numbers=("NCHW", "OIHW", "NCHW"))


if __name__ == "__main__":
    in_channels, out_channels, kernel_size, padding = 4, 12, 3, 1
    key = jax.random.PRNGKey(0)
    kx, kp = jax.random.split(key)

    x = jax.random.normal(kx, (2, in_channels, 16, 16), jnp.float32)
    params = init_params(kp, in_channels, out_channels, kernel_size, padding)

    out = d_ac_forward(x, params)
    out = jax.block_until_ready(out)

    # Reference: XLA convolutions with the same semantics as the PyTorch
    # branches (stride=1, dilation=1, groups=1, bias=False, zero DCN offsets).
    ref = jnp.concatenate([
        _ref_conv(x, params["w_square"], padding, padding),
        _ref_conv(x, params["w_ver"], padding, 0),
        _ref_conv(x, params["w_hor"], 0, padding),
    ], axis=1)

    expected_c = (int(out_channels * 0.5) + int(out_channels * 0.33)
                  + int(out_channels * 0.167))
    assert out.shape == (2, expected_c, 16, 16), out.shape
    assert jnp.allclose(out, ref, atol=1e-4, rtol=1e-4)

    print("KERNEL_OK")
</pallas_src>

<mosaic_0001>
module attributes {stable_mosaic.version = 11 : i64} {
  func.func @_d_ac_gemm_kernel(%arg0: i32, %arg1: memref<11x36xf32, #tpu.memory_space<vmem>>, %arg2: memref<1x36x256xf32, #tpu.memory_space<vmem>>, %arg3: memref<1x11x256xf32, #tpu.memory_space<vmem>>) attributes {dimension_semantics = [#tpu.dimension_semantics<parallel>], iteration_bounds = array<i64: 2>, scalar_prefetch = 0 : i64, scratch_operands = 0 : i64, tpu.core_type = #tpu.core_type<tc>, window_params = [{pipeline_mode = #tpu.pipeline_mode<synchronous>, transform_indices = @transform_0, window_bounds = array<i64: 11, 36>}, {transform_indices = @transform_1, window_bounds = array<i64: 1, 36, 256>}, {transform_indices = @transform_2, window_bounds = array<i64: 1, 11, 256>}]} {
    %c0 = arith.constant 0 : index
    %c0_0 = arith.constant 0 : index
    %0 = vector.load %arg1[%c0, %c0_0] : memref<11x36xf32, #tpu.memory_space<vmem>>, vector<11x36xf32>
    %c0_1 = arith.constant 0 : index
    %c0_2 = arith.constant 0 : index
    %c0_3 = arith.constant 0 : index
    %1 = vector.load %arg2[%c0_1, %c0_2, %c0_3] : memref<1x36x256xf32, #tpu.memory_space<vmem>>, vector<1x36x256xf32>
    %2 = vector.shape_cast %1 : vector<1x36x256xf32> to vector<36x256xf32>
    %cst = arith.constant dense<0.000000e+00> : vector<11x256xf32>
    %3 = tpu.matmul %0, %2, %cst {dimension_numbers = #tpu.dot_dimension_numbers<[1], [0], [0], [1], [0, 0, 1, 1], [], []>} : vector<11x36xf32>, vector<36x256xf32>, vector<11x256xf32> -> vector<11x256xf32>
    %c0_4 = arith.constant 0 : index
    %c0_5 = arith.constant 0 : index
    %c0_6 = arith.constant 0 : index
    %4 = vector.load %arg3[%c0_4, %c0_5, %c0_6] : memref<1x11x256xf32, #tpu.memory_space<vmem>>, vector<1x11x256xf32>
    %5 = vector.shape_cast %4 : vector<1x11x256xf32> to vector<11x256xf32>
    %6 = vector.shape_cast %3 : vector<11x256xf32> to vector<1x11x256xf32>
    tpu.vector_store %arg3[%c0_4, %c0_5, %c0_6], %6 {strides = array<i32>} : memref<1x11x256xf32, #tpu.memory_space<vmem>>, vector<1x11x256xf32>,
    return
  }
  func.func @transform_0(%arg0: i32) -> (i32, i32) {
    %c0_i32 = arith.constant 0 : i32
    %c0_i32_0 = arith.constant 0 : i32
    %c0_i32_1 = arith.constant 0 : i32
    return %c0_i32, %c0_i32_0 : i32, i32
  }
  func.func @transform_1(%arg0: i32) -> (i32, i32, i32) {
    %c0_i32 = arith.constant 0 : i32
    %c0_i32_0 = arith.constant 0 : i32
    %c0_i32_1 = arith.constant 0 : i32
    return %arg0, %c0_i32, %c0_i32_0 : i32, i32, i32
  }
  func.func @transform_2(%arg0: i32) -> (i32, i32, i32) {
    %c0_i32 = arith.constant 0 : i32
    %c0_i32_0 = arith.constant 0 : i32
    %c0_i32_1 = arith.constant 0 : i32
    return %arg0, %c0_i32, %c0_i32_0 : i32, i32, i32
  }
}

</mosaic_0001>

<llo_original>
// kernel: tpu_custom_call.1
$region0: #{tpu_custom_call.1}
  #allocation0 [shape = 'u32[]', space=smem, size = 0x4, offset = 0x4, fixed_abs, tag = 'smem constant byte address 0x4 - core index']
  #allocation1 [shape = 'u32[72,128]{1,0:T(1,128)}', space=vmem, size = 0x9000, scoped, tag = 'internal scratch']
  %s0 = inlined_call_operand.vmem [shape: f32[11,36], index: 0, kind: input, shape index: {}]
  %s1 = inlined_call_operand.vmem [shape: f32[2,36,256], index: 1, kind: input, shape index: {}]
  %s2 = inlined_call_operand.vmem [shape: f32[2,11,256], index: 2, kind: output, shape index: {}]
  %s3 = sld [smem:[#allocation0]]
  $region41: #{tpu_custom_call.1} parent=0
    _
  %s5 = ssub.s32 1, %s3
  %s6 = scalar_select 0, %s5, %s3
  loop: start=0, step=1, limit=4
  $region2: #{tpu_custom_call.1} parent=0 // loop_pre_header
    _
  $region3: #{tpu_custom_call.1} parent=0 // loop_header
    %s8 = sphi 0, %s12
    %p9 = scmp.ge.s32.totalorder %s8, 4
    %s16 = sphi 0, %s16
    %s18 = sphi 0, %s16
    %s19 = sphi 0, %s18
    %s33 = sphi 0, %s19
    %s39 = sphi 0, %s41
    %s42 = sphi 0, %s39
    %s43 = sphi 0, %s42
    %s59 = sphi 0, %s43
    %s65 = sphi 0, %s67
    %s68 = sphi 0, %s65
    %s69 = sphi 0, %s68
    %s85 = sphi 0, %s69
  $region4: #{tpu_custom_call.1} parent=0 // loop_header_branch
    %11 = sbr.rel (%p9) target = $region8
  $region5: #{tpu_custom_call.1} parent=0 // loop_body
    %s13 = ssub.s32 %s8, 1
    %s14 = ssub.s32 %s8, 2
    %s15 = sadd.s32 %s8, 1
    %s17 = sadd.s32 %s16, 1
    %p20 = scmp.eq.s32.totalorder %s8, 1
    %p21 = scmp.ne.s32.totalorder %s16, %s18
    %p22 = scmp.eq.s32.totalorder %s8, 0
    %p23 = por %p21, %p22
    %p24 = scmp.ne.s32.totalorder %s16, %s18
    %p25 = scmp.eq.s32.totalorder %s13, 1
    %p26 = por %p24, %p25
    %p27 = scmp.ne.s32.totalorder %s18, %s19
    %p28 = scmp.eq.s32.totalorder %s13, 0
    %p29 = por %p27, %p28
    %p30 = scmp.ne.s32.totalorder %s18, %s19
    %p31 = scmp.eq.s32.totalorder %s14, 1
    %p32 = por %p30, %p31
    %p34 = scmp.ne.s32.totalorder %s19, %s33
    %p35 = scmp.eq.s32.totalorder %s14, 0
    %p36 = por %p34, %p35
    %s37 = ssub.s32 %s8, %s15
    %p38 = scmp.eq.s32.totalorder %s37, 0
    %s40 = sadd.s32 %s39, 1
    %s41 = scalar_select %p38, %s39, %s40
    %p44 = pneg %p38
    %p45 = scmp.eq.s32.totalorder %s8, 1
    %p46 = por %p44, %p45
    %p47 = scmp.ne.s32.totalorder %s39, %s42
    %p48 = scmp.eq.s32.totalorder %s8, 0
    %p49 = por %p47, %p48
    %p50 = scmp.ne.s32.totalorder %s39, %s42
    %p51 = scmp.eq.s32.totalorder %s13, 1
    %p52 = por %p50, %p51
    %p53 = scmp.ne.s32.totalorder %s42, %s43
    %p54 = scmp.eq.s32.totalorder %s13, 0
    %p55 = por %p53, %p54
    %p56 = scmp.ne.s32.totalorder %s42, %s43
    %p57 = scmp.eq.s32.totalorder %s14, 1
    %p58 = por %p56, %p57
    %p60 = scmp.ne.s32.totalorder %s43, %s59
    %p61 = scmp.eq.s32.totalorder %s14, 0
    %p62 = por %p60, %p61
    %s63 = ssub.s32 %s8, %s15
    %p64 = scmp.eq.s32.totalorder %s63, 0
    %s66 = sadd.s32 %s65, 1
    %s67 = scalar_select %p64, %s65, %s66
    %p70 = pneg %p64
    %p71 = scmp.eq.s32.totalorder %s8, 1
    %p72 = por %p70, %p71
    %p73 = scmp.ne.s32.totalorder %s65, %s68
    %p74 = scmp.eq.s32.totalorder %s8, 0
    %p75 = por %p73, %p74
    %p76 = scmp.ne.s32.totalorder %s65, %s68
    %p77 = scmp.eq.s32.totalorder %s13, 1
    %p78 = por %p76, %p77
    %p79 = scmp.ne.s32.totalorder %s68, %s69
    %p80 = scmp.eq.s32.totalorder %s13, 0
    %p81 = por %p79, %p80
    %p82 = scmp.ne.s32.totalorder %s68, %s69
    %p83 = scmp.eq.s32.totalorder %s14, 1
    %p84 = por %p82, %p83
    %p86 = scmp.ne.s32.totalorder %s69, %s85
    %p87 = scmp.eq.s32.totalorder %s14, 0
    %p88 = por %p86, %p87
    %p89 = scmp.le.s32.totalorder 1, %s8
    %p90 = scmp.lt.s32.totalorder %s8, 3
    %p91 = pnand %p89, %p90
    %p92 = pneg %p91
    // Predicated region
    $region9: #{tpu_custom_call.1} parent=5 // pred_check
      _
    $region10: #{tpu_custom_call.1} parent=5 // pred_check_branch
      %94 = sbr.rel (%p91) target = $region12
    $region11: #{tpu_custom_call.1} parent=5 // pred_region
      %s95 = ssub.s32 %s8, 1
      // Predicated region
      $region13: #{tpu_custom_call.1} parent=11 // pred_check
        %p96 = pneg %p29
      $region14: #{tpu_custom_call.1} parent=11 // pred_check_branch
        %98 = sbr.rel (%p96) target = $region16
      $region15: #{tpu_custom_call.1} parent=11 // pred_region
        _
      $region16: #{tpu_custom_call.1} parent=11 // pred_fallthru
        _
    $region12: #{tpu_custom_call.1} parent=5 // pred_fallthru
      _
    %p99 = scmp.lt.s32.totalorder %s8, 2
    // Predicated region
    $region17: #{tpu_custom_call.1} parent=5 // pred_check
      %p100 = pneg %p99
    $region18: #{tpu_custom_call.1} parent=5 // pred_check_branch
      %102 = sbr.rel (%p100) target = $region20
    $region19: #{tpu_custom_call.1} parent=5 // pred_region
      // Predicated region
      $region21: #{tpu_custom_call.1} parent=19 // pred_check
        %p103 = pneg %p49
      $region22: #{tpu_custom_call.1} parent=19 // pred_check_branch
        %105 = sbr.rel (%p103) target = $region24
      $region23: #{tpu_custom_call.1} parent=19 // pred_region
        %p106 = scmp.lt.s32.totalorder %s8, 1
        %s107 = scalar_select %p106, %s8, 1
        %s108 = smul.addr %s107, 10
        %s109 = smul.addr %s108, 8
        %s110 = scalar_lea.vmem %s1, %s109
      $region24: #{tpu_custom_call.1} parent=19 // pred_fallthru
        _
    $region20: #{tpu_custom_call.1} parent=5 // pred_fallthru
      _
    %p111 = scmp.le.s32.totalorder 1, %s8
    %p112 = scmp.lt.s32.totalorder %s8, 3
    %p113 = pnand %p111, %p112
    %p114 = pneg %p113
    // Predicated region
    $region25: #{tpu_custom_call.1} parent=5 // pred_check
      _
    $region26: #{tpu_custom_call.1} parent=5 // pred_check_branch
      %116 = sbr.rel (%p113) target = $region28
    $region27: #{tpu_custom_call.1} parent=5 // pred_region
      %s117 = ssub.s32 %s8, 1
      %p118 = pneg %p29
      %p119 = pneg %p26
      %p120 = scmp.lt.s32.totalorder %s13, 1
      %s121 = scalar_select %p120, %s13, 1
      %s122 = smul.addr %s121, 10
      %s123 = smul.addr %s122, 8
      %s124 = scalar_lea.vmem %s1, %s123
      %p125 = pneg %p55
      %p126 = pneg %p52
      %p127 = pneg %p81
      %p128 = pneg %p78
      %p129 = scmp.lt.s32.totalorder %s13, 1
      %s130 = scalar_select %p129, %s13, 1
      %s131 = smul.addr %s130, 4
      %s132 = smul.addr %s131, 8
      %s133 = scalar_lea.vmem %s2, %s132
      %p134 = scmp.lt.s32.totalorder %s13, 1
      %s135 = scalar_select %p134, %s13, 1
      %s136 = smul.addr %s135, 10
      %s137 = smul.addr %s136, 8
      %s138 = scalar_lea.vmem %s1, %s137
      %p139 = scmp.lt.s32.totalorder %s13, 1
      %s140 = scalar_select %p139, %s13, 1
      %s141 = smul.addr %s140, 4
      %s142 = smul.addr %s141, 8
      %s143 = scalar_lea.vmem %s2, %s142
      %v144 = vld [vmem:[%s0] sm:$0xff]
      %v145 = vld [vmem:[%s0 + $0x8] sm:$0x7]
      %v146 = vld [vmem:[%s138] sm:$0xff]
      %v147 = vld [vmem:[%s138 + $0x8] sm:$0xff]
      %v148 = vld [vmem:[%s138 + $0x10] sm:$0xff]
      %v149 = vld [vmem:[%s138 + $0x18] sm:$0xff]
      %v150 = vld [vmem:[%s138 + $0x20] sm:$0xff]
      %v151 = vld [vmem:[%s138 + $0x28] sm:$0xff]
      %v152 = vld [vmem:[%s138 + $0x30] sm:$0xff]
      %v153 = vld [vmem:[%s138 + $0x38] sm:$0xff]
      %v154 = vld [vmem:[%s138 + $0x40] sm:$0xf]
      %v155 = vld [vmem:[%s138 + $0x48] sm:$0xf]
      %vm156 = vcmask 293888
      %v158 = vsel %vm156, %v144, 0
      %v161 = vsel %vm156, %v145, 0
      %vm163 = vcmask 1043456
      %v165 = vsel %vm163, %v154, 0
      %v168 = vsel %vm163, %v155, 0
      %170 = vmatpush.msra.mxu0 0.0
      %171 = vmatpush.msra.mxu0 0.0
      %172 = vmatpush.msra.mxu0 0.0
      %173 = vmatpush.msra.mxu0 0.0
      %174 = vmatpush.msra.mxu0 0.0
      %175 = vmatpush.msra.mxu0 0.0
      %176 = vmatpush.msra.mxu0 0.0
      %177 = vmatpush.msra.mxu0 0.0
      %178 = vmatpush.msra.mxu0 0.0
      %179 = vmatpush.msra.mxu0 0.0
      %180 = vmatpush.msra.mxu0 0.0
      %181 = vmatpush.msra.mxu0 %v165
      %182 = vmatpush.msra.mxu0 %v152
      %183 = vmatpush.msra.mxu0 %v150
      %184 = vmatpush.msra.mxu0 %v148
      %185 = vmatpush.msra.mxu0 %v146
      %186 = vmatmul.f32.gmra.mxu0 %v158
      %v187 = vpop.f32.mrf.mxu0
      %v188 = vadd.f32 0.0, %v187
      %189 = vmatmul.f32.gmra.mxu0 %v161
      %v190 = vpop.f32.mrf.mxu0
      %v191 = vadd.f32 0.0, %v190
      %192 = vdwg.mxu0
      %193 = vmatpush.msra.mxu0 0.0
      %194 = vmatpush.msra.mxu0 0.0
      %195 = vmatpush.msra.mxu0 0.0
      %196 = vmatpush.msra.mxu0 0.0
      %197 = vmatpush.msra.mxu0 0.0
      %198 = vmatpush.msra.mxu0 0.0
      %199 = vmatpush.msra.mxu0 0.0
      %200 = vmatpush.msra.mxu0 0.0
      %201 = vmatpush.msra.mxu0 0.0
      %202 = vmatpush.msra.mxu0 0.0
      %203 = vmatpush.msra.mxu0 0.0
      %204 = vmatpush.msra.mxu0 %v168
      %205 = vmatpush.msra.mxu0 %v153
      %206 = vmatpush.msra.mxu0 %v151
      %207 = vmatpush.msra.mxu0 %v149
      %208 = vmatpush.msra.mxu0 %v147
      %209 = vmatmul.f32.gmra.mxu0 %v158
      %v210 = vpop.f32.mrf.mxu0
      %v211 = vadd.f32 0.0, %v210
      %212 = vmatmul.f32.gmra.mxu0 %v161
      %v213 = vpop.f32.mrf.mxu0
      %v214 = vadd.f32 0.0, %v213
      %215 = vdwg.mxu0
      %216 = vst [vmem:[%s143] sm:$0xff] %v188
      %217 = vst [vmem:[%s143 + $0x8] sm:$0xff] %v211
      %218 = vst [vmem:[%s143 + $0x10] sm:$0x7] %v191
      %219 = vst [vmem:[%s143 + $0x18] sm:$0x7] %v214
      %p220 = scmp.lt.s32.totalorder %s13, 1
      %s221 = scalar_select %p220, %s13, 1
      %s222 = smul.addr %s221, 4
      %s223 = smul.addr %s222, 8
      %s224 = scalar_lea.vmem %s2, %s223
      // Predicated region
      $region29: #{tpu_custom_call.1} parent=27 // pred_check
        %p225 = pneg %p78
      $region30: #{tpu_custom_call.1} parent=27 // pred_check_branch
        %227 = sbr.rel (%p225) target = $region32
      $region31: #{tpu_custom_call.1} parent=27 // pred_region
        _
      $region32: #{tpu_custom_call.1} parent=27 // pred_fallthru
        _
    $region28: #{tpu_custom_call.1} parent=5 // pred_fallthru
      _
    %p228 = scmp.le.s32.totalorder 2, %s8
    // Predicated region
    $region33: #{tpu_custom_call.1} parent=5 // pred_check
      %p229 = pneg %p228
    $region34: #{tpu_custom_call.1} parent=5 // pred_check_branch
      %231 = sbr.rel (%p229) target = $region36
    $region35: #{tpu_custom_call.1} parent=5 // pred_region
      %s232 = ssub.s32 %s8, 2
      // Predicated region
      $region37: #{tpu_custom_call.1} parent=35 // pred_check
        %p233 = pneg %p84
      $region38: #{tpu_custom_call.1} parent=35 // pred_check_branch
        %235 = sbr.rel (%p233) target = $region40
      $region39: #{tpu_custom_call.1} parent=35 // pred_region
        %p236 = scmp.lt.s32.totalorder %s14, 1
        %s237 = scalar_select %p236, %s14, 1
        %s238 = smul.addr %s237, 4
        %s239 = smul.addr %s238, 8
        %s240 = scalar_lea.vmem %s2, %s239
      $region40: #{tpu_custom_call.1} parent=35 // pred_fallthru
        _
    $region36: #{tpu_custom_call.1} parent=5 // pred_fallthru
      _
  $region6: #{tpu_custom_call.1} parent=0 // loop_footer
    %s12 = sadd.s32 1, %s8
  $region7: #{tpu_custom_call.1} parent=0 // loop_footer_branch
    %7 = sbr.rel target = $region3
  $region8: #{tpu_custom_call.1} parent=0 // loop_exit
    _

</llo_original>
